<compile_context>
chip_gen: v7x
topology: tpu7x:2x2x1
jax: 0.10.0
libtpu: 0.0.40
codegen_flags: <defaults>
</compile_context>

<pallas_src>
import functools

import jax
import jax.numpy as jnp
from jax.experimental import pallas as pl
from jax.experimental.pallas import tpu as pltpu

_LANES = 128
_MAX_TILE_ROWS = 4096      # 4096 * 128 * 4 B = 2 MiB per f32 input block


def _round_up(x, m):
    return ((x + m - 1) // m) * m


def _num_tensorcores():
    """Best-effort TensorCore count (2 on v7x, 1 on v5e/v6e). Defaults to 1."""
    try:
        info = pltpu.get_tpu_info()
        for name in ("num_cores", "core_count", "num_tensorcores", "tensorcore_count"):
            v = getattr(info, name, None)
            if isinstance(v, int) and v >= 1:
                return v
    except Exception:
        pass
    return 1


# ----------------------------- kernel -------------------------------------- #
def _freq_char_sum_kernel(p_ref, t_ref, o_ref, acc_ref, *, eps):
    """Per-split sum of sqrt((p - t)^2 + eps) over a stream of (tile_r, 128) tiles."""
    i = pl.program_id(1)

    @pl.when(i == 0)
    def _init():
        acc_ref[...] = jnp.zeros_like(acc_ref)

    # Straight sub / mul+add / sqrt chain: the EUP sqrt dual-issues with the VPU
    # ops and everything hides under the HBM stream (no mask, no iota, no casts).
    d = p_ref[...] - t_ref[...]
    val = jnp.sqrt(d * d + eps)

    # Fold (tile_r, 128) -> (tile_r//8, 8, 128): tile-preserving (free) reshape,
    # then a leading-axis VPU sum into a tiny (8, 128) accumulator — no large
    # accumulator read-modify-write per step.
    tile_r = val.shape[0]
    acc_ref[...] += val.reshape(tile_r // 8, 8, _LANES).sum(axis=0)

    @pl.when(i == pl.num_programs(1) - 1)
    def _finalize():
        o_ref[0, 0] = jnp.sum(acc_ref[...])


# ----------------------------- wrapper ------------------------------------- #
def _complex_to_f32_components(x):
    """complex64 (..., Wf) -> float32 (..., Wf, 2) with as few HBM passes as possible."""
    try:
        return jax.lax.bitcast_convert_type(x, jnp.float32)
    except Exception:
        # TODO(synk): lax.bitcast_convert_type rejects complex dtypes on some jax
        # versions; fall back to one interleaving stack (still a single pass
        # instead of four separate real/imag slab extractions).
        return jnp.stack([jnp.real(x), jnp.imag(x)], axis=-1)


def _to_slab(components, rows):
    """Flatten and zero-pad to a lane-dense (rows, 128) f32 slab."""
    flat = components.reshape(-1)
    n = flat.shape[0]
    padded = rows * _LANES
    if padded != n:
        flat = jnp.pad(flat, (0, padded - n))
    return flat.reshape(rows, _LANES)


@functools.partial(jax.jit, static_argnames=("loss_weight", "eps", "reduction"))
def frequency_char_loss_pallas(pred, target, weight=None, *, loss_weight=1.0,
                               eps=1e-12, reduction="mean"):
    if reduction not in ("none", "mean", "sum"):
        raise ValueError(f"Unsupported reduction mode: {reduction}")
    # Matching the PyTorch module's forward: `weight` and `reduction` are
    # accepted but unused — the result is always loss_weight * mean(freq_distance).
    del weight

    # TODO(synk): rfft2 has no Pallas TPU equivalent; computed via jnp.fft (XLA FFT).
    pred_fft = jnp.fft.rfft2(pred.astype(jnp.float32), norm="backward")
    target_fft = jnp.fft.rfft2(target.astype(jnp.float32), norm="backward")

    n_valid = pred_fft.size          # number of frequency bins (mean denominator)
    total_f32 = 2 * n_valid          # interleaved re/im component count

    # ---- static tiling geometry -------------------------------------------
    rows_raw = pl.cdiv(total_f32, _LANES)
    n_tiles_min = pl.cdiv(rows_raw, _MAX_TILE_ROWS)
    n_splits = min(_num_tensorcores(), n_tiles_min)        # 1 on v5e/v6e
    tiles_total = _round_up(n_tiles_min, n_splits)          # exact, no clamping
    tiles_per_split = tiles_total // n_splits
    tile_r = _round_up(pl.cdiv(rows_raw, tiles_total), 8)   # multiple of 8, <= 4096
    rows = tiles_total * tile_r
    n_pad = rows * _LANES - total_f32                        # each pad adds sqrt(eps)

    p_slab = _to_slab(_complex_to_f32_components(pred_fft), rows)
    t_slab = _to_slab(_complex_to_f32_components(target_fft), rows)

    def in_map(s, i):
        return (s * tiles_per_split + i, 0)

    if tiles_per_split >= 3:
        # Triple-buffer the two input streams on long grids to hide DMA
        # setup/turnaround at step boundaries (2 inputs x 3 x 2 MiB = 12 MiB).
        in_spec = pl.BlockSpec((tile_r, _LANES), in_map, pipeline_mode=pl.Buffered(3))
    else:
        in_spec = pl.BlockSpec((tile_r, _LANES), in_map)

    kernel = functools.partial(_freq_char_sum_kernel, eps=float(eps))

    partials = pl.pallas_call(
        kernel,
        out_shape=jax.ShapeDtypeStruct((n_splits, 1), jnp.float32),
        grid_spec=pltpu.PrefetchScalarGridSpec(
            num_scalar_prefetch=0,
            grid=(n_splits, tiles_per_split),
            in_specs=[in_spec, in_spec],
            out_specs=pl.BlockSpec((1, 1), lambda s, i: (s, 0),
                                   memory_space=pltpu.SMEM),
            scratch_shapes=[pltpu.VMEM((8, _LANES), jnp.float32)],
        ),
        compiler_params=pltpu.CompilerParams(
            dimension_semantics=("parallel", "arbitrary"),
            # 2 inputs x (2..3) buffers x <=2 MiB + (8,128) accumulator << 32 MiB;
            # fits comfortably on v5e/v6e (128 MiB VMEM) and v7x (64 MiB VMEM).
            vmem_limit_bytes=32 * 1024 * 1024,
        ),
    )(p_slab, t_slab)

    # Padded elements (zeros in both slabs) each contributed exactly sqrt(eps);
    # remove that analytically instead of masking in the hot loop.
    total = jnp.sum(partials) - jnp.float32(n_pad) * jnp.sqrt(jnp.float32(eps))
    return total * jnp.float32(loss_weight / n_valid)


# ------------------------------ demo ---------------------------------------- #
if __name__ == "__main__":
    key = jax.random.PRNGKey(0)
    k1, k2 = jax.random.split(key)

    N, C, H, W = 2, 4, 16, 16
    pred = jax.random.normal(k1, (N, C, H, W), dtype=jnp.float32)
    target = jax.random.normal(k2, (N, C, H, W), dtype=jnp.float32)

    eps = 1e-12

    out = frequency_char_loss_pallas(pred, target, loss_weight=1.0, eps=eps,
                                     reduction="mean")
    # 'reduction' is ignored by the torch forward (always mean) — verify that too.
    out2 = frequency_char_loss_pallas(pred, target, loss_weight=0.5, eps=eps,
                                      reduction="sum")
    jax.block_until_ready((out, out2))

    pf = jnp.fft.rfft2(pred, norm="backward")
    tf = jnp.fft.rfft2(target, norm="backward")
    ref = jnp.mean(jnp.sqrt((pf.real - tf.real) ** 2 + eps)
                   + jnp.sqrt((pf.imag - tf.imag) ** 2 + eps))

    assert jnp.allclose(out, ref, rtol=1e-5, atol=1e-5), (out, ref)
    assert jnp.allclose(out2, 0.5 * ref, rtol=1e-5, atol=1e-5), (out2, 0.5 * ref)

    print("KERNEL_OK")
</pallas_src>

<mosaic_0001>
module attributes {stable_mosaic.version = 11 : i64} {
  func.func @_freq_char_sum_kernel(%arg0: i32, %arg1: i32, %arg2: memref<24x128xf32, #tpu.memory_space<vmem>>, %arg3: memref<24x128xf32, #tpu.memory_space<vmem>>, %arg4: memref<1x1xf32, #tpu.memory_space<smem>>, %arg5: memref<8x128xf32, #tpu.memory_space<vmem>>) attributes {dimension_semantics = [#tpu.dimension_semantics<parallel>, #tpu.dimension_semantics<arbitrary>], iteration_bounds = array<i64: 1, 1>, scalar_prefetch = 0 : i64, scratch_operands = 1 : i64, tpu.core_type = #tpu.core_type<tc>, window_params = [{transform_indices = @transform_0, window_bounds = array<i64: 24, 128>}, {transform_indices = @transform_1, window_bounds = array<i64: 24, 128>}, {transform_indices = @transform_2, window_bounds = array<i64: 1, 1>}]} {
    %c0_i32 = arith.constant 0 : i32
    %0 = arith.cmpi eq, %arg1, %c0_i32 : i32
    %1 = arith.extui %0 : i1 to i32
    %c0_i32_0 = arith.constant 0 : i32
    %2 = arith.cmpi ne, %1, %c0_i32_0 : i32
    scf.if %2 {
      %cst_11 = arith.constant 0.000000e+00 : f32
      %18 = vector.broadcast %cst_11 : f32 to vector<8x128xf32>
      %c0_12 = arith.constant 0 : index
      %c0_13 = arith.constant 0 : index
      %19 = vector.load %arg5[%c0_12, %c0_13] : memref<8x128xf32, #tpu.memory_space<vmem>>, vector<8x128xf32>
      tpu.vector_store %arg5[%c0_12, %c0_13], %18 {strides = array<i32>} : memref<8x128xf32, #tpu.memory_space<vmem>>, vector<8x128xf32>,
    } else {
    }
    %c0 = arith.constant 0 : index
    %c0_1 = arith.constant 0 : index
    %3 = vector.load %arg2[%c0, %c0_1] : memref<24x128xf32, #tpu.memory_space<vmem>>, vector<24x128xf32>
    %c0_2 = arith.constant 0 : index
    %c0_3 = arith.constant 0 : index
    %4 = vector.load %arg3[%c0_2, %c0_3] : memref<24x128xf32, #tpu.memory_space<vmem>>, vector<24x128xf32>
    %5 = arith.subf %3, %4 : vector<24x128xf32>
    %6 = arith.mulf %5, %5 : vector<24x128xf32>
    %cst = arith.constant 9.99999996E-13 : f32
    %7 = vector.broadcast %cst : f32 to vector<24x128xf32>
    %8 = arith.addf %6, %7 : vector<24x128xf32>
    %9 = math.sqrt %8 : vector<24x128xf32>
    %c0_4 = arith.constant 0 : index
    %c0_5 = arith.constant 0 : index
    %10 = vector.load %arg5[%c0_4, %c0_5] : memref<8x128xf32, #tpu.memory_space<vmem>>, vector<8x128xf32>
    %11 = vector.shape_cast %9 : vector<24x128xf32> to vector<3x8x128xf32>
    %cst_6 = arith.constant dense<0.000000e+00> : vector<8x128xf32>
    %12 = vector.multi_reduction <add>, %11, %cst_6 [0] : vector<3x8x128xf32> to vector<8x128xf32>
    %13 = arith.addf %10, %12 : vector<8x128xf32>
    %c0_7 = arith.constant 0 : index
    %c0_8 = arith.constant 0 : index
    %14 = vector.load %arg5[%c0_7, %c0_8] : memref<8x128xf32, #tpu.memory_space<vmem>>, vector<8x128xf32>
    tpu.vector_store %arg5[%c0_7, %c0_8], %13 {strides = array<i32>} : memref<8x128xf32, #tpu.memory_space<vmem>>, vector<8x128xf32>,
    %c0_i32_9 = arith.constant 0 : i32
    %15 = arith.cmpi eq, %arg1, %c0_i32_9 : i32
    %16 = arith.extui %15 : i1 to i32
    %c0_i32_10 = arith.constant 0 : i32
    %17 = arith.cmpi ne, %16, %c0_i32_10 : i32
    scf.if %17 {
      %c0_11 = arith.constant 0 : index
      %c0_12 = arith.constant 0 : index
      %18 = vector.load %arg5[%c0_11, %c0_12] : memref<8x128xf32, #tpu.memory_space<vmem>>, vector<8x128xf32>
      %19 = vector.shape_cast %18 : vector<8x128xf32> to vector<1x8x128xf32>
      %cst_13 = arith.constant dense<0.000000e+00> : vector<1xf32>
      %20 = vector.multi_reduction <add>, %19, %cst_13 [1, 2] : vector<1x8x128xf32> to vector<1xf32>
      %21 = vector.shape_cast %20 : vector<1xf32> to vector<1x1x1xf32>
      %22 = vector.extract %21[0, 0, 0] : f32 from vector<1x1x1xf32>
      %c0_14 = arith.constant 0 : index
      %c0_15 = arith.constant 0 : index
      %23 = memref.load %arg4[%c0_14, %c0_15] : memref<1x1xf32, #tpu.memory_space<smem>>
      memref.store %22, %arg4[%c0_14, %c0_15] : memref<1x1xf32, #tpu.memory_space<smem>>
    } else {
    }
    return
  }
  func.func @transform_0(%arg0: i32, %arg1: i32) -> (i32, i32) {
    %c1_i32 = arith.constant 1 : i32
    %0 = arith.muli %arg0, %c1_i32 : i32
    %1 = arith.addi %0, %arg1 : i32
    %c0_i32 = arith.constant 0 : i32
    %c0_i32_0 = arith.constant 0 : i32
    return %1, %c0_i32 : i32, i32
  }
  func.func @transform_1(%arg0: i32, %arg1: i32) -> (i32, i32) {
    %c1_i32 = arith.constant 1 : i32
    %0 = arith.muli %arg0, %c1_i32 : i32
    %1 = arith.addi %0, %arg1 : i32
    %c0_i32 = arith.constant 0 : i32
    %c0_i32_0 = arith.constant 0 : i32
    return %1, %c0_i32 : i32, i32
  }
  func.func @transform_2(%arg0: i32, %arg1: i32) -> (i32, i32) {
    %c0_i32 = arith.constant 0 : i32
    %c0_i32_0 = arith.constant 0 : i32
    return %arg0, %c0_i32 : i32, i32
  }
}

</mosaic_0001>

<llo_original>
// kernel: frequency_char_loss_pallas.1
$region0: #{frequency_char_loss_pallas.1}
  #allocation0 [shape = 'u32[]', space=smem, size = 0x4, offset = 0x4, fixed_abs, tag = 'smem constant byte address 0x4 - core index']
  #allocation1 [shape = 'u32[144,128]{1,0:T(1,128)}', space=vmem, size = 0x12000, scoped, tag = 'internal scratch']
  #allocation2 [shape = 'f32[8,128]{1,0:T(8,128)}', space=vmem, size = 0x1000, scoped, tag = 'scratch operand']
  %s0 = inlined_call_operand.vmem [shape: f32[24,128], index: 0, kind: input, shape index: {}]
  %s1 = inlined_call_operand.vmem [shape: f32[24,128], index: 1, kind: input, shape index: {}]
  %s2 = inlined_call_operand.hbm [shape: f32[1,1], index: 2, kind: output, shape index: {}]
  %s3 = sld [smem:[#allocation0]]
  $region26: #{frequency_char_loss_pallas.1} parent=0
    _
  %s5 = ssub.s32 1, %s3
  %s6 = scalar_select 0, %s5, %s3
  $region1: #{frequency_char_loss_pallas.1} parent=0
    #allocation3 [shape = 'u8[512]{0}', space=smem, size = 0x200, scoped, tag = 'output window, operand 0, single buffered']
    #allocation4 [shape = 's32[1]{0}', space=sflag, size = 0x4, scoped, tag = 'scoped memory for frequency_char_loss_pallas.1']
    %7 = vsyncpa [#allocation4], 0
    // Predicated region
    $region2: #{frequency_char_loss_pallas.1} parent=1 // pred_check
      _
    $region3: #{frequency_char_loss_pallas.1} parent=1 // pred_check_branch
      %9 = sbr.rel (0) target = $region5
    $region4: #{frequency_char_loss_pallas.1} parent=1 // pred_region
      %s10 = sadd.s32 0, 0
      %s11 = smul.u32 3, %s10
      %p12 = scmp.lt.s32.totalorder %s11, 2
      %s13 = scalar_select %p12, %s11, 2
      %s14 = smul.addr %s13, 8
      %s15 = scalar_lea.vmem %s0, %s14
      %s16 = sadd.s32 0, 0
      %s17 = smul.u32 3, %s16
    $region5: #{frequency_char_loss_pallas.1} parent=1 // pred_fallthru
      _
    // Predicated region
    $region6: #{frequency_char_loss_pallas.1} parent=1 // pred_check
      _
    $region7: #{frequency_char_loss_pallas.1} parent=1 // pred_check_branch
      %19 = sbr.rel (0) target = $region9
    $region8: #{frequency_char_loss_pallas.1} parent=1 // pred_region
      %s20 = sadd.s32 0, 0
      %s21 = smul.u32 3, %s20
      %p22 = scmp.lt.s32.totalorder %s21, 2
      %s23 = scalar_select %p22, %s21, 2
      %s24 = smul.addr %s23, 8
      %s25 = scalar_lea.vmem %s1, %s24
      %s26 = sadd.s32 0, 0
      %s27 = smul.u32 3, %s26
    $region9: #{frequency_char_loss_pallas.1} parent=1 // pred_fallthru
      _
    %s28 = sadd.s32 0, 0
    %s29 = smul.u32 3, %s28
    %p30 = scmp.lt.s32.totalorder %s29, 2
    %s31 = scalar_select %p30, %s29, 2
    %s32 = smul.addr %s31, 8
    %s33 = scalar_lea.vmem %s0, %s32
    %s34 = sadd.s32 0, 0
    %s35 = smul.u32 3, %s34
    %p36 = scmp.lt.s32.totalorder %s35, 2
    %s37 = scalar_select %p36, %s35, 2
    %s38 = smul.addr %s37, 8
    %s39 = scalar_lea.vmem %s1, %s38
    %s40 = sadd.s32 0, 0
    %s41 = smul.u32 3, %s40
    %p42 = scmp.lt.s32.totalorder %s41, 2
    %s43 = scalar_select %p42, %s41, 2
    %s44 = smul.addr %s43, 8
    %s45 = scalar_lea.vmem %s0, %s44
    %s46 = sadd.s32 0, 0
    %s47 = smul.u32 3, %s46
    %s48 = sadd.s32 0, 0
    %s49 = smul.u32 3, %s48
    %p50 = scmp.lt.s32.totalorder %s49, 2
    %s51 = scalar_select %p50, %s49, 2
    %s52 = smul.addr %s51, 8
    %s53 = scalar_lea.vmem %s1, %s52
    %s54 = sadd.s32 0, 0
    %s55 = smul.u32 3, %s54
    %p56 = scmp.eq.s32.totalorder 0, 0
    // Predicated region
    $region10: #{frequency_char_loss_pallas.1} parent=1 // pred_check
      %p57 = pneg %p56
    $region11: #{frequency_char_loss_pallas.1} parent=1 // pred_check_branch
      %59 = sbr.rel (%p57) target = $region13
    $region12: #{frequency_char_loss_pallas.1} parent=1 // pred_region
      %60 = vst [vmem:[#allocation2] sm:$0xff] 0.0
    $region13: #{frequency_char_loss_pallas.1} parent=1 // pred_fallthru
      _
    %v61 = vld [vmem:[%s45] sm:$0xff]
    %v62 = vld [vmem:[%s45 + $0x8] sm:$0xff]
    %v63 = vld [vmem:[%s45 + $0x10] sm:$0xff]
    %v64 = vld [vmem:[%s53] sm:$0xff]
    %v65 = vld [vmem:[%s53 + $0x8] sm:$0xff]
    %v66 = vld [vmem:[%s53 + $0x10] sm:$0xff]
    %v67 = vsub.f32 %v61, %v64
    %v68 = vsub.f32 %v62, %v65
    %v69 = vsub.f32 %v63, %v66
    %v70 = vmul.f32 %v67, %v67
    %v71 = vmul.f32 %v68, %v68
    %v72 = vmul.f32 %v69, %v69
    %v73 = vadd.f32 %v70, 1e-12
    %v74 = vadd.f32 %v71, 1e-12
    %v75 = vadd.f32 %v72, 1e-12
    %v76 = vrsqrt.pop %v73
    %v77 = vmul.f32 %v73, %v76
    %vm78 = vcmp.eq.f32.partialorder %v73, inf
    %v79 = vsel %vm78, %v73, %v77
    %vm80 = vcmp.eq.f32.partialorder %v73, 0.0
    %v81 = vand.u32 %v73, 2147483648
    %v82 = vsel %vm80, %v81, %v79
    %v83 = vrsqrt.pop %v74
    %v84 = vmul.f32 %v74, %v83
    %vm85 = vcmp.eq.f32.partialorder %v74, inf
    %v86 = vsel %vm85, %v74, %v84
    %vm87 = vcmp.eq.f32.partialorder %v74, 0.0
    %v88 = vand.u32 %v74, 2147483648
    %v89 = vsel %vm87, %v88, %v86
    %v90 = vrsqrt.pop %v75
    %v91 = vmul.f32 %v75, %v90
    %vm92 = vcmp.eq.f32.partialorder %v75, inf
    %v93 = vsel %vm92, %v75, %v91
    %vm94 = vcmp.eq.f32.partialorder %v75, 0.0
    %v95 = vand.u32 %v75, 2147483648
    %v96 = vsel %vm94, %v95, %v93
    %v97 = vld [vmem:[#allocation2] sm:$0xff]
    %v98 = vadd.f32 %v82, %v89
    %v99 = vadd.f32 %v98, %v96
    %v100 = vadd.f32 %v97, %v99
    %101 = vst [vmem:[#allocation2] sm:$0xff] %v100
    // Predicated region
    $region14: #{frequency_char_loss_pallas.1} parent=1 // pred_check
      %p102 = pneg %p56
    $region15: #{frequency_char_loss_pallas.1} parent=1 // pred_check_branch
      %104 = sbr.rel (%p102) target = $region17
    $region16: #{frequency_char_loss_pallas.1} parent=1 // pred_region
      %v105 = vld [vmem:[#allocation2] sm:$0xff]
      %106 = vadd.xlane.f32.xlu0 %v105
      %v107 = vpop.xlane.xlu0 %106
      %v108 = vrot.slane %v107, 4
      %v109 = vadd.f32 %v107, %v108
      %v110 = vrot.slane %v109, 2
      %v111 = vadd.f32 %v109, %v110
      %v112 = vrot.slane %v111, 1
      %v113 = vadd.f32 %v111, %v112
      %s114 = vtos %v113
      %s115 = scalar_lea.smem [#allocation3], 0
      %116 = sst [smem:[%s115]] %s114
    $region17: #{frequency_char_loss_pallas.1} parent=1 // pred_fallthru
      _
    // Predicated region
    $region18: #{frequency_char_loss_pallas.1} parent=1 // pred_check
      _
    $region19: #{frequency_char_loss_pallas.1} parent=1 // pred_check_branch
      %118 = sbr.rel (0) target = $region21
    $region20: #{frequency_char_loss_pallas.1} parent=1 // pred_region
      %s120 = ssub.s32 16, 16
      %121 = vsyncadd [#allocation4], %s120
      %124 = dma.smem_to_hbm [#allocation3], 16, %s2, [#allocation4]
    $region21: #{frequency_char_loss_pallas.1} parent=1 // pred_fallthru
      _
    // Predicated region
    $region22: #{frequency_char_loss_pallas.1} parent=1 // pred_check
      _
    $region23: #{frequency_char_loss_pallas.1} parent=1 // pred_check_branch
      %126 = sbr.rel (0) target = $region25
    $region24: #{frequency_char_loss_pallas.1} parent=1 // pred_region
      %127 = dma.done [#allocation4], 16
    $region25: #{frequency_char_loss_pallas.1} parent=1 // pred_fallthru
      _
    %128 = sfence
    %129 = vsyncpa [#allocation4], 1

</llo_original>
